<compile_context>
chip_gen: v5e
topology: v5e:2x2
jax: 0.10.0
libtpu: 0.0.40
codegen_flags: <defaults>
</compile_context>

<pallas_src>
from functools import partial

import jax
import jax.numpy as jnp
from jax import lax
from jax.experimental import pallas as pl
from jax.experimental.pallas import tpu as pltpu

EPS = 1e-5  # PyTorch nn.LayerNorm default eps


def encoder_kernel(x_ref, w_ref, bias_ref, g2_ref, pos_ref, cls_ref, o_ref):
    # x_ref : (kb, N, patch_dim)   -- kb batch elements worth of patch rows
    # w_ref : (patch_dim, dim)     -- LN1-affine already folded in
    # bias_ref: (1, dim)           -- b1 @ W + bw
    # g2_ref: (1, dim)             -- LN2 gamma (beta folded into pos)
    # pos_ref: (1, N, dim)         -- pos_embedding[:, 1:N+1] + b2
    # cls_ref: (1, 1, dim)         -- cls_token + pos_embedding[:, 0]
    # o_ref : (kb, N+1, dim)
    kb, n, pd = x_ref.shape
    dim = w_ref.shape[1]

    x = x_ref[...].reshape(kb * n, pd)          # leading-dim merge (layout no-op)

    # --- LayerNorm(patch_dim), one-pass stats, affine folded into W/bias ---
    inv_pd = 1.0 / pd
    s1 = jnp.sum(x, axis=-1, keepdims=True)
    s2 = jnp.sum(x * x, axis=-1, keepdims=True)
    mu = s1 * inv_pd
    var = jnp.maximum(s2 * inv_pd - mu * mu, 0.0)
    xn = (x - mu) * lax.rsqrt(var + EPS)

    # --- Linear(patch_dim -> dim) on the MXU (bf16 operands if W is bf16) ---
    y = jnp.dot(xn.astype(w_ref.dtype), w_ref[...],
                preferred_element_type=jnp.float32) + bias_ref[...]

    # --- LayerNorm(dim), one-pass stats, beta folded into pos ---
    inv_d = 1.0 / dim
    t1 = jnp.sum(y, axis=-1, keepdims=True)
    t2 = jnp.sum(y * y, axis=-1, keepdims=True)
    mu2 = t1 * inv_d
    var2 = jnp.maximum(t2 * inv_d - mu2 * mu2, 0.0)
    yn = (y - mu2) * lax.rsqrt(var2 + EPS) * g2_ref[...]

    # --- write patch rows (1..N) and cls row (0) directly; no wrapper concat ---
    o_ref[:, 1:, :] = yn.reshape(kb, n, dim) + pos_ref[...]
    o_ref[:, 0:1, :] = jnp.broadcast_to(cls_ref[...], (kb, 1, dim))


def _pick_batches_per_tile(B, N, target_rows=512):
    """Largest kb dividing B with kb*N <= target_rows (>=1).

    ~512 rows per grid step keeps the MXU busy and amortizes the ~0.35 us
    per-step overhead while staying well inside the default scoped-VMEM
    budget for typical ViT sizes (patch_dim/dim <= 1024, f32).
    """
    kb = max(1, min(B, target_rows // max(N, 1)))
    while B % kb != 0:
        kb -= 1
    return kb


@partial(jax.jit, static_argnames=("patch_height", "patch_width", "use_bf16_matmul"))
def encoder_forward(img, params, *, patch_height, patch_width,
                    use_bf16_matmul=False):
    B, C, H, W = img.shape
    p1, p2 = patch_height, patch_width
    h, w = H // p1, W // p2
    N = h * w
    patch_dim = p1 * p2 * C
    dim = params["w"].shape[1]

    # Rearrange 'b c (h p1) (w p2) -> b (h w) (p1 p2 c)'  (glue transpose)
    x = img.reshape(B, C, h, p1, w, p2)
    x = jnp.transpose(x, (0, 2, 4, 3, 5, 1)).reshape(B, N, patch_dim)

    # Fold LN1 affine into the linear layer (host-side, once).
    w_fold = params["g1"].reshape(patch_dim, 1) * params["w"]        # (pd, dim)
    bias_fold = params["b1"] @ params["w"] + params["bw"]            # (1, dim)
    if use_bf16_matmul:
        # v6e/v7x: bf16 MXU operands (re-validate tolerance at ~1e-2 if used).
        w_fold = w_fold.astype(jnp.bfloat16)

    pos = params["pos_embedding"]
    pos_patch = pos[:, 1:N + 1] + params["b2"]                       # (1, N, dim)
    cls_row = params["cls_token"] + pos[:, 0:1]                      # (1, 1, dim)

    kb = _pick_batches_per_tile(B, N)
    grid = (B // kb,)

    out = pl.pallas_call(
        encoder_kernel,
        out_shape=jax.ShapeDtypeStruct((B, N + 1, dim), jnp.float32),
        grid=grid,
        in_specs=[
            pl.BlockSpec((kb, N, patch_dim), lambda i: (i, 0, 0)),   # x rows
            pl.BlockSpec((patch_dim, dim), lambda i: (0, 0)),        # folded W
            pl.BlockSpec((1, dim), lambda i: (0, 0)),                # folded bias
            pl.BlockSpec((1, dim), lambda i: (0, 0)),                # g2
            pl.BlockSpec((1, N, dim), lambda i: (0, 0, 0)),          # pos'(patch)
            pl.BlockSpec((1, 1, dim), lambda i: (0, 0, 0)),          # cls row
        ],
        out_specs=pl.BlockSpec((kb, N + 1, dim), lambda i: (i, 0, 0)),
        compiler_params=pltpu.CompilerParams(
            dimension_semantics=("parallel",)),
    )(x, w_fold, bias_fold, params["g2"], pos_patch, cls_row)

    # TODO(synk): nn.Dropout(emb_dropout) is identity in eval mode; not applied.
    return out


def reference_forward(img, params, *, patch_height, patch_width):
    """Pure-JAX reference mirroring the PyTorch forward (unfolded, two-pass LN)."""
    B, C, H, W = img.shape
    p1, p2 = patch_height, patch_width
    h, w = H // p1, W // p2
    N = h * w
    x = img.reshape(B, C, h, p1, w, p2)
    x = jnp.transpose(x, (0, 2, 4, 3, 5, 1)).reshape(B, N, p1 * p2 * C)

    def ln(v, g, b):
        mu = jnp.mean(v, -1, keepdims=True)
        var = jnp.mean((v - mu) ** 2, -1, keepdims=True)
        return (v - mu) * lax.rsqrt(var + EPS) * g + b

    x = ln(x, params["g1"][0], params["b1"][0])
    x = x @ params["w"] + params["bw"][0]
    x = ln(x, params["g2"][0], params["b2"][0])
    cls = jnp.broadcast_to(params["cls_token"], (B, 1, x.shape[-1]))
    x = jnp.concatenate([cls, x], axis=1)
    x = x + params["pos_embedding"][:, :N + 1]
    return x


if __name__ == "__main__":
    # Small shapes consistent with the module's forward.
    B, C, H, W = 2, 4, 16, 16
    patch_height = patch_width = 4
    num_patches = (H // patch_height) * (W // patch_width)   # 16
    patch_dim = patch_height * patch_width * C               # 64
    dim = 32

    key = jax.random.PRNGKey(0)
    (k_img, k_w, k_bw, k_pos, k_cls,
     k_g1, k_b1, k_g2, k_b2) = jax.random.split(key, 9)

    img = jax.random.normal(k_img, (B, C, H, W), dtype=jnp.float32)

    params = {
        # Non-trivial LayerNorm affines so the host-side folding is exercised.
        "g1": 1.0 + 0.1 * jax.random.normal(k_g1, (1, patch_dim), jnp.float32),
        "b1": 0.1 * jax.random.normal(k_b1, (1, patch_dim), jnp.float32),
        "w": (jax.random.normal(k_w, (patch_dim, dim), jnp.float32)
              * (1.0 / jnp.sqrt(patch_dim))),
        "bw": 0.01 * jax.random.normal(k_bw, (1, dim), jnp.float32),
        "g2": 1.0 + 0.1 * jax.random.normal(k_g2, (1, dim), jnp.float32),
        "b2": 0.1 * jax.random.normal(k_b2, (1, dim), jnp.float32),
        "pos_embedding": jax.random.normal(k_pos, (1, num_patches + 1, dim),
                                           jnp.float32),
        "cls_token": jax.random.normal(k_cls, (1, 1, dim), jnp.float32),
    }

    out = encoder_forward(img, params, patch_height=patch_height,
                          patch_width=patch_width)
    out = jax.block_until_ready(out)

    ref = reference_forward(img, params, patch_height=patch_height,
                            patch_width=patch_width)
    assert out.shape == (B, num_patches + 1, dim)
    # atol loosened slightly vs 1e-5: LN-affine folding and one-pass LN stats
    # reassociate float ops (bitwise differences only, no accuracy loss).
    assert jnp.allclose(out, ref, atol=1e-4, rtol=1e-4), "mismatch vs reference"

    print("KERNEL_OK")
</pallas_src>

<mosaic_0001>
module attributes {stable_mosaic.version = 11 : i64} {
  func.func @encoder_kernel(%arg0: i32, %arg1: memref<2x16x64xf32, #tpu.memory_space<vmem>>, %arg2: memref<64x32xf32, #tpu.memory_space<vmem>>, %arg3: memref<1x32xf32, #tpu.memory_space<vmem>>, %arg4: memref<1x32xf32, #tpu.memory_space<vmem>>, %arg5: memref<1x16x32xf32, #tpu.memory_space<vmem>>, %arg6: memref<1x1x32xf32, #tpu.memory_space<vmem>>, %arg7: memref<2x17x32xf32, #tpu.memory_space<vmem>>) attributes {dimension_semantics = [#tpu.dimension_semantics<parallel>], iteration_bounds = array<i64: 1>, scalar_prefetch = 0 : i64, scratch_operands = 0 : i64, tpu.core_type = #tpu.core_type<tc>, window_params = [{transform_indices = @transform_0, window_bounds = array<i64: 2, 16, 64>}, {pipeline_mode = #tpu.pipeline_mode<synchronous>, transform_indices = @transform_1, window_bounds = array<i64: 64, 32>}, {pipeline_mode = #tpu.pipeline_mode<synchronous>, transform_indices = @transform_2, window_bounds = array<i64: 1, 32>}, {pipeline_mode = #tpu.pipeline_mode<synchronous>, transform_indices = @transform_3, window_bounds = array<i64: 1, 32>}, {pipeline_mode = #tpu.pipeline_mode<synchronous>, transform_indices = @transform_4, window_bounds = array<i64: 1, 16, 32>}, {pipeline_mode = #tpu.pipeline_mode<synchronous>, transform_indices = @transform_5, window_bounds = array<i64: 1, 1, 32>}, {transform_indices = @transform_6, window_bounds = array<i64: 2, 17, 32>}]} {
    %c0 = arith.constant 0 : index
    %c0_0 = arith.constant 0 : index
    %c0_1 = arith.constant 0 : index
    %0 = vector.load %arg1[%c0, %c0_0, %c0_1] : memref<2x16x64xf32, #tpu.memory_space<vmem>>, vector<2x16x64xf32>
    %1 = vector.shape_cast %0 : vector<2x16x64xf32> to vector<32x64xf32>
    %cst = arith.constant dense<0.000000e+00> : vector<32xf32>
    %2 = vector.multi_reduction <add>, %1, %cst [1] : vector<32x64xf32> to vector<32xf32>
    %3 = vector.shape_cast %2 : vector<32xf32> to vector<32x1xf32>
    %4 = arith.mulf %1, %1 : vector<32x64xf32>
    %cst_2 = arith.constant dense<0.000000e+00> : vector<32xf32>
    %5 = vector.multi_reduction <add>, %4, %cst_2 [1] : vector<32x64xf32> to vector<32xf32>
    %6 = vector.shape_cast %5 : vector<32xf32> to vector<32x1xf32>
    %cst_3 = arith.constant 1.562500e-02 : f32
    %7 = vector.broadcast %cst_3 : f32 to vector<32x1xf32>
    %8 = arith.mulf %3, %7 : vector<32x1xf32>
    %cst_4 = arith.constant 1.562500e-02 : f32
    %9 = vector.broadcast %cst_4 : f32 to vector<32x1xf32>
    %10 = arith.mulf %6, %9 : vector<32x1xf32>
    %11 = arith.mulf %8, %8 : vector<32x1xf32>
    %12 = arith.subf %10, %11 : vector<32x1xf32>
    %cst_5 = arith.constant 0.000000e+00 : f32
    %13 = vector.broadcast %cst_5 : f32 to vector<32x1xf32>
    %14 = arith.maximumf %12, %13 : vector<32x1xf32>
    %15 = vector.broadcast %8 : vector<32x1xf32> to vector<32x64xf32>
    %16 = arith.subf %1, %15 : vector<32x64xf32>
    %cst_6 = arith.constant 9.99999974E-6 : f32
    %17 = vector.broadcast %cst_6 : f32 to vector<32x1xf32>
    %18 = arith.addf %14, %17 : vector<32x1xf32>
    %19 = math.rsqrt %18 : vector<32x1xf32>
    %20 = vector.broadcast %19 : vector<32x1xf32> to vector<32x64xf32>
    %21 = arith.mulf %16, %20 : vector<32x64xf32>
    %c0_7 = arith.constant 0 : index
    %c0_8 = arith.constant 0 : index
    %22 = vector.load %arg2[%c0_7, %c0_8] : memref<64x32xf32, #tpu.memory_space<vmem>>, vector<64x32xf32>
    %cst_9 = arith.constant dense<0.000000e+00> : vector<32x32xf32>
    %23 = tpu.matmul %21, %22, %cst_9 {dimension_numbers = #tpu.dot_dimension_numbers<[1], [0], [0], [1], [0, 0, 1, 1], [], []>} : vector<32x64xf32>, vector<64x32xf32>, vector<32x32xf32> -> vector<32x32xf32>
    %c0_10 = arith.constant 0 : index
    %c0_11 = arith.constant 0 : index
    %24 = vector.load %arg3[%c0_10, %c0_11] : memref<1x32xf32, #tpu.memory_space<vmem>>, vector<1x32xf32>
    %25 = vector.broadcast %24 : vector<1x32xf32> to vector<32x32xf32>
    %26 = arith.addf %23, %25 : vector<32x32xf32>
    %cst_12 = arith.constant dense<0.000000e+00> : vector<32xf32>
    %27 = vector.multi_reduction <add>, %26, %cst_12 [1] : vector<32x32xf32> to vector<32xf32>
    %28 = vector.shape_cast %27 : vector<32xf32> to vector<32x1xf32>
    %29 = arith.mulf %26, %26 : vector<32x32xf32>
    %cst_13 = arith.constant dense<0.000000e+00> : vector<32xf32>
    %30 = vector.multi_reduction <add>, %29, %cst_13 [1] : vector<32x32xf32> to vector<32xf32>
    %31 = vector.shape_cast %30 : vector<32xf32> to vector<32x1xf32>
    %cst_14 = arith.constant 3.125000e-02 : f32
    %32 = vector.broadcast %cst_14 : f32 to vector<32x1xf32>
    %33 = arith.mulf %28, %32 : vector<32x1xf32>
    %cst_15 = arith.constant 3.125000e-02 : f32
    %34 = vector.broadcast %cst_15 : f32 to vector<32x1xf32>
    %35 = arith.mulf %31, %34 : vector<32x1xf32>
    %36 = arith.mulf %33, %33 : vector<32x1xf32>
    %37 = arith.subf %35, %36 : vector<32x1xf32>
    %cst_16 = arith.constant 0.000000e+00 : f32
    %38 = vector.broadcast %cst_16 : f32 to vector<32x1xf32>
    %39 = arith.maximumf %37, %38 : vector<32x1xf32>
    %40 = vector.broadcast %33 : vector<32x1xf32> to vector<32x32xf32>
    %41 = arith.subf %26, %40 : vector<32x32xf32>
    %cst_17 = arith.constant 9.99999974E-6 : f32
    %42 = vector.broadcast %cst_17 : f32 to vector<32x1xf32>
    %43 = arith.addf %39, %42 : vector<32x1xf32>
    %44 = math.rsqrt %43 : vector<32x1xf32>
    %45 = vector.broadcast %44 : vector<32x1xf32> to vector<32x32xf32>
    %46 = arith.mulf %41, %45 : vector<32x32xf32>
    %c0_18 = arith.constant 0 : index
    %c0_19 = arith.constant 0 : index
    %47 = vector.load %arg4[%c0_18, %c0_19] : memref<1x32xf32, #tpu.memory_space<vmem>>, vector<1x32xf32>
    %48 = vector.broadcast %47 : vector<1x32xf32> to vector<32x32xf32>
    %49 = arith.mulf %46, %48 : vector<32x32xf32>
    %50 = vector.shape_cast %49 : vector<32x32xf32> to vector<2x16x32xf32>
    %c0_20 = arith.constant 0 : index
    %c0_21 = arith.constant 0 : index
    %c0_22 = arith.constant 0 : index
    %51 = vector.load %arg5[%c0_20, %c0_21, %c0_22] : memref<1x16x32xf32, #tpu.memory_space<vmem>>, vector<1x16x32xf32>
    %52 = vector.broadcast %51 : vector<1x16x32xf32> to vector<2x16x32xf32>
    %53 = arith.addf %50, %52 : vector<2x16x32xf32>
    %c0_23 = arith.constant 0 : index
    %c1 = arith.constant 1 : index
    %c0_24 = arith.constant 0 : index
    %54 = vector.load %arg7[%c0_23, %c1, %c0_24] : memref<2x17x32xf32, #tpu.memory_space<vmem>>, vector<2x16x32xf32>
    tpu.vector_store %arg7[%c0_23, %c1, %c0_24], %53 {strides = array<i32>} : memref<2x17x32xf32, #tpu.memory_space<vmem>>, vector<2x16x32xf32>,
    %c0_25 = arith.constant 0 : index
    %c0_26 = arith.constant 0 : index
    %c0_27 = arith.constant 0 : index
    %55 = vector.load %arg6[%c0_25, %c0_26, %c0_27] : memref<1x1x32xf32, #tpu.memory_space<vmem>>, vector<1x1x32xf32>
    %56 = vector.shape_cast %55 : vector<1x1x32xf32> to vector<1x1x32xf32>
    %57 = vector.broadcast %56 : vector<1x1x32xf32> to vector<2x1x32xf32>
    %c0_28 = arith.constant 0 : index
    %c0_29 = arith.constant 0 : index
    %c0_30 = arith.constant 0 : index
    %58 = vector.load %arg7[%c0_28, %c0_29, %c0_30] : memref<2x17x32xf32, #tpu.memory_space<vmem>>, vector<2x1x32xf32>
    tpu.vector_store %arg7[%c0_28, %c0_29, %c0_30], %57 {strides = array<i32>} : memref<2x17x32xf32, #tpu.memory_space<vmem>>, vector<2x1x32xf32>,
    return
  }
  func.func @transform_0(%arg0: i32) -> (i32, i32, i32) {
    %c0_i32 = arith.constant 0 : i32
    %c0_i32_0 = arith.constant 0 : i32
    %c0_i32_1 = arith.constant 0 : i32
    return %arg0, %c0_i32, %c0_i32_0 : i32, i32, i32
  }
  func.func @transform_1(%arg0: i32) -> (i32, i32) {
    %c0_i32 = arith.constant 0 : i32
    %c0_i32_0 = arith.constant 0 : i32
    %c0_i32_1 = arith.constant 0 : i32
    return %c0_i32, %c0_i32_0 : i32, i32
  }
  func.func @transform_2(%arg0: i32) -> (i32, i32) {
    %c0_i32 = arith.constant 0 : i32
    %c0_i32_0 = arith.constant 0 : i32
    %c0_i32_1 = arith.constant 0 : i32
    return %c0_i32, %c0_i32_0 : i32, i32
  }
  func.func @transform_3(%arg0: i32) -> (i32, i32) {
    %c0_i32 = arith.constant 0 : i32
    %c0_i32_0 = arith.constant 0 : i32
    %c0_i32_1 = arith.constant 0 : i32
    return %c0_i32, %c0_i32_0 : i32, i32
  }
  func.func @transform_4(%arg0: i32) -> (i32, i32, i32) {
    %c0_i32 = arith.constant 0 : i32
    %c0_i32_0 = arith.constant 0 : i32
    %c0_i32_1 = arith.constant 0 : i32
    %c0_i32_2 = arith.constant 0 : i32
    return %c0_i32, %c0_i32_0, %c0_i32_1 : i32, i32, i32
  }
  func.func @transform_5(%arg0: i32) -> (i32, i32, i32) {
    %c0_i32 = arith.constant 0 : i32
    %c0_i32_0 = arith.constant 0 : i32
    %c0_i32_1 = arith.constant 0 : i32
    %c0_i32_2 = arith.constant 0 : i32
    return %c0_i32, %c0_i32_0, %c0_i32_1 : i32, i32, i32
  }
  func.func @transform_6(%arg0: i32) -> (i32, i32, i32) {
    %c0_i32 = arith.constant 0 : i32
    %c0_i32_0 = arith.constant 0 : i32
    %c0_i32_1 = arith.constant 0 : i32
    return %arg0, %c0_i32, %c0_i32_0 : i32, i32, i32
  }
}

</mosaic_0001>

<llo_original>
// kernel: encoder_forward.1
$region0: #{encoder_forward.1}
  #allocation0 [shape = 'u32[]', space=smem, size = 0x4, offset = 0x4, fixed_abs, tag = 'smem constant byte address 0x4 - core index']
  #allocation1 [shape = 'u32[72,128]{1,0:T(1,128)}', space=vmem, size = 0x9000, scoped, tag = 'internal scratch']
  %s0 = inlined_call_operand.vmem [shape: f32[2,16,64], index: 0, kind: input, shape index: {}]
  %s1 = inlined_call_operand.vmem [shape: f32[64,32], index: 1, kind: input, shape index: {}]
  %s2 = inlined_call_operand.vmem [shape: f32[1,32], index: 2, kind: input, shape index: {}]
  %s3 = inlined_call_operand.vmem [shape: f32[1,32], index: 3, kind: input, shape index: {}]
  %s4 = inlined_call_operand.vmem [shape: f32[1,16,32], index: 4, kind: input, shape index: {}]
  %s5 = inlined_call_operand.vmem [shape: f32[1,1,32], index: 5, kind: input, shape index: {}]
  %s6 = inlined_call_operand.vmem [shape: f32[2,17,32], index: 6, kind: output, shape index: {}]
  %s7 = sld [smem:[#allocation0]]
  $region34: #{encoder_forward.1} parent=0
    _
  %s9 = ssub.s32 1, %s7
  %s10 = scalar_select 0, %s9, %s7
  // Predicated region
  $region2: #{encoder_forward.1} parent=0 // pred_check
    _
  $region3: #{encoder_forward.1} parent=0 // pred_check_branch
    %12 = sbr.rel (0) target = $region5
  $region4: #{encoder_forward.1} parent=0 // pred_region
    _
  $region5: #{encoder_forward.1} parent=0 // pred_fallthru
    _
  // Predicated region
  $region6: #{encoder_forward.1} parent=0 // pred_check
    _
  $region7: #{encoder_forward.1} parent=0 // pred_check_branch
    %14 = sbr.rel (0) target = $region9
  $region8: #{encoder_forward.1} parent=0 // pred_region
    _
  $region9: #{encoder_forward.1} parent=0 // pred_fallthru
    _
  // Predicated region
  $region10: #{encoder_forward.1} parent=0 // pred_check
    _
  $region11: #{encoder_forward.1} parent=0 // pred_check_branch
    %16 = sbr.rel (0) target = $region13
  $region12: #{encoder_forward.1} parent=0 // pred_region
    _
  $region13: #{encoder_forward.1} parent=0 // pred_fallthru
    _
  // Predicated region
  $region14: #{encoder_forward.1} parent=0 // pred_check
    _
  $region15: #{encoder_forward.1} parent=0 // pred_check_branch
    %18 = sbr.rel (0) target = $region17
  $region16: #{encoder_forward.1} parent=0 // pred_region
    _
  $region17: #{encoder_forward.1} parent=0 // pred_fallthru
    _
  // Predicated region
  $region18: #{encoder_forward.1} parent=0 // pred_check
    _
  $region19: #{encoder_forward.1} parent=0 // pred_check_branch
    %20 = sbr.rel (0) target = $region21
  $region20: #{encoder_forward.1} parent=0 // pred_region
    _
  $region21: #{encoder_forward.1} parent=0 // pred_fallthru
    _
  // Predicated region
  $region22: #{encoder_forward.1} parent=0 // pred_check
    _
  $region23: #{encoder_forward.1} parent=0 // pred_check_branch
    %22 = sbr.rel (0) target = $region25
  $region24: #{encoder_forward.1} parent=0 // pred_region
    _
  $region25: #{encoder_forward.1} parent=0 // pred_fallthru
    _
  %v23 = vld [vmem:[%s0] sm:$0xff]
  %v24 = vld [vmem:[%s0 + $0x8] sm:$0xff]
  %v25 = vld [vmem:[%s0 + $0x10] sm:$0xff]
  %v26 = vld [vmem:[%s0 + $0x18] sm:$0xff]
  %vm27 = vcmask 523264
  %v28 = vsel %vm27, %v23, 0.0
  %29 = vadd.xlane.f32.xlu0 %v28
  %v30 = vpop.xlane.xlu0 %29
  %v31 = vsel %vm27, %v24, 0.0
  %32 = vadd.xlane.f32.xlu0 %v31
  %v33 = vpop.xlane.xlu0 %32
  %v34 = vsel %vm27, %v25, 0.0
  %35 = vadd.xlane.f32.xlu0 %v34
  %v36 = vpop.xlane.xlu0 %35
  %v37 = vsel %vm27, %v26, 0.0
  %38 = vadd.xlane.f32.xlu0 %v37
  %v39 = vpop.xlane.xlu0 %38
  %v40 = vmul.f32 %v23, %v23
  %v41 = vmul.f32 %v24, %v24
  %v42 = vmul.f32 %v25, %v25
  %v43 = vmul.f32 %v26, %v26
  %v44 = vsel %vm27, %v40, 0.0
  %45 = vadd.xlane.f32.xlu0 %v44
  %v46 = vpop.xlane.xlu0 %45
  %v47 = vsel %vm27, %v41, 0.0
  %48 = vadd.xlane.f32.xlu0 %v47
  %v49 = vpop.xlane.xlu0 %48
  %v50 = vsel %vm27, %v42, 0.0
  %51 = vadd.xlane.f32.xlu0 %v50
  %v52 = vpop.xlane.xlu0 %51
  %v53 = vsel %vm27, %v43, 0.0
  %54 = vadd.xlane.f32.xlu0 %v53
  %v55 = vpop.xlane.xlu0 %54
  %v56 = vmul.f32 %v30, 0.015625
  %v57 = vmul.f32 %v33, 0.015625
  %v58 = vmul.f32 %v36, 0.015625
  %v59 = vmul.f32 %v39, 0.015625
  %v60 = vmul.f32 %v46, 0.015625
  %v61 = vmul.f32 %v49, 0.015625
  %v62 = vmul.f32 %v52, 0.015625
  %v63 = vmul.f32 %v55, 0.015625
  %v64 = vmul.f32 %v56, %v56
  %v65 = vmul.f32 %v57, %v57
  %v66 = vmul.f32 %v58, %v58
  %v67 = vmul.f32 %v59, %v59
  %v68 = vsub.f32 %v60, %v64
  %v69 = vsub.f32 %v61, %v65
  %v70 = vsub.f32 %v62, %v66
  %v71 = vsub.f32 %v63, %v67
  %v72 = vmax.f32 %v68, 0.0
  %v73 = vmax.f32 %v69, 0.0
  %v74 = vmax.f32 %v70, 0.0
  %v75 = vmax.f32 %v71, 0.0
  %v76 = vsub.f32 %v23, %v56
  %v77 = vsub.f32 %v24, %v57
  %v78 = vsub.f32 %v25, %v58
  %v79 = vsub.f32 %v26, %v59
  %v80 = vadd.f32 %v72, 1e-05
  %v81 = vadd.f32 %v73, 1e-05
  %v82 = vadd.f32 %v74, 1e-05
  %v83 = vadd.f32 %v75, 1e-05
  %v84 = vrsqrt.pop %v80
  %v85 = vmul.f32 %v84, %v80
  %v86 = vmul.f32 %v85, %v84
  %v87 = vmul.f32 0.5, %v86
  %v88 = vsub.f32 1.5, %v87
  %v89 = vmul.f32 %v84, %v88
  %vm90 = vweird.f32 %v80
  %vm91 = vweird.f32 %v84
  %vm92 = vmor %vm90, %vm91
  %v93 = vsel %vm92, %v84, %v89
  %v94 = vrsqrt.pop %v81
  %v95 = vmul.f32 %v94, %v81
  %v96 = vmul.f32 %v95, %v94
  %v97 = vmul.f32 0.5, %v96
  %v98 = vsub.f32 1.5, %v97
  %v99 = vmul.f32 %v94, %v98
  %vm100 = vweird.f32 %v81
  %vm101 = vweird.f32 %v94
  %vm102 = vmor %vm100, %vm101
  %v103 = vsel %vm102, %v94, %v99
  %v104 = vrsqrt.pop %v82
  %v105 = vmul.f32 %v104, %v82
  %v106 = vmul.f32 %v105, %v104
  %v107 = vmul.f32 0.5, %v106
  %v108 = vsub.f32 1.5, %v107
  %v109 = vmul.f32 %v104, %v108
  %vm110 = vweird.f32 %v82
  %vm111 = vweird.f32 %v104
  %vm112 = vmor %vm110, %vm111
  %v113 = vsel %vm112, %v104, %v109
  %v114 = vrsqrt.pop %v83
  %v115 = vmul.f32 %v114, %v83
  %v116 = vmul.f32 %v115, %v114
  %v117 = vmul.f32 0.5, %v116
  %v118 = vsub.f32 1.5, %v117
  %v119 = vmul.f32 %v114, %v118
  %vm120 = vweird.f32 %v83
  %vm121 = vweird.f32 %v114
  %vm122 = vmor %vm120, %vm121
  %v123 = vsel %vm122, %v114, %v119
  %v124 = vmul.f32 %v76, %v93
  %v125 = vmul.f32 %v77, %v103
  %v126 = vmul.f32 %v78, %v113
  %v127 = vmul.f32 %v79, %v123
  %v128 = vld [vmem:[%s1] sm:$0xff]
  %v129 = vld [vmem:[%s1 + $0x8] sm:$0xff]
  %v130 = vld [vmem:[%s1 + $0x10] sm:$0xff]
  %v131 = vld [vmem:[%s1 + $0x18] sm:$0xff]
  %v132 = vld [vmem:[%s1 + $0x20] sm:$0xff]
  %v133 = vld [vmem:[%s1 + $0x28] sm:$0xff]
  %v134 = vld [vmem:[%s1 + $0x30] sm:$0xff]
  %v135 = vld [vmem:[%s1 + $0x38] sm:$0xff]
  %v136 = vld [vmem:[%s2] sm:$0x1]
  %v138 = vperm.slane %v136, 0
  %v141 = vsel %vm27, %v124, 0
  %v144 = vsel %vm27, %v125, 0
  %v147 = vsel %vm27, %v126, 0
  %v150 = vsel %vm27, %v127, 0
  %152 = vmatpush.msra.mxu0 0.0
  %153 = vmatpush.msra.mxu0 0.0
  %154 = vmatpush.msra.mxu0 0.0
  %155 = vmatpush.msra.mxu0 0.0
  %156 = vmatpush.msra.mxu0 0.0
  %157 = vmatpush.msra.mxu0 0.0
  %158 = vmatpush.msra.mxu0 0.0
  %159 = vmatpush.msra.mxu0 0.0
  %160 = vmatpush.msra.mxu0 %v135
  %161 = vmatpush.msra.mxu0 %v134
  %162 = vmatpush.msra.mxu0 %v133
  %163 = vmatpush.msra.mxu0 %v132
  %164 = vmatpush.msra.mxu0 %v131
  %165 = vmatpush.msra.mxu0 %v130
  %166 = vmatpush.msra.mxu0 %v129
  %167 = vmatpush.msra.mxu0 %v128
  %168 = vmatmul.f32.gmra.mxu0 %v141
  %v169 = vpop.f32.mrf.mxu0
  %v170 = vadd.f32 %v138, %v169
  %171 = vmatmul.f32.gmra.mxu0 %v144
  %v172 = vpop.f32.mrf.mxu0
  %v173 = vadd.f32 %v138, %v172
  %174 = vmatmul.f32.gmra.mxu0 %v147
  %v175 = vpop.f32.mrf.mxu0
  %v176 = vadd.f32 %v138, %v175
  %177 = vmatmul.f32.gmra.mxu0 %v150
  %v178 = vpop.f32.mrf.mxu0
  %v179 = vadd.f32 %v138, %v178
  %180 = vdwg.mxu0
  %vm181 = vcmask 261120
  %v182 = vsel %vm181, %v170, 0.0
  %183 = vadd.xlane.f32.xlu0 %v182
  %v184 = vpop.xlane.xlu0 %183
  %v185 = vsel %vm181, %v173, 0.0
  %186 = vadd.xlane.f32.xlu0 %v185
  %v187 = vpop.xlane.xlu0 %186
  %v188 = vsel %vm181, %v176, 0.0
  %189 = vadd.xlane.f32.xlu0 %v188
  %v190 = vpop.xlane.xlu0 %189
  %v191 = vsel %vm181, %v179, 0.0
  %192 = vadd.xlane.f32.xlu0 %v191
  %v193 = vpop.xlane.xlu0 %192
  %v194 = vmul.f32 %v170, %v170
  %v195 = vmul.f32 %v173, %v173
  %v196 = vmul.f32 %v176, %v176
  %v197 = vmul.f32 %v179, %v179
  %v198 = vsel %vm181, %v194, 0.0
  %199 = vadd.xlane.f32.xlu0 %v198
  %v200 = vpop.xlane.xlu0 %199
  %v201 = vsel %vm181, %v195, 0.0
  %202 = vadd.xlane.f32.xlu0 %v201
  %v203 = vpop.xlane.xlu0 %202
  %v204 = vsel %vm181, %v196, 0.0
  %205 = vadd.xlane.f32.xlu0 %v204
  %v206 = vpop.xlane.xlu0 %205
  %v207 = vsel %vm181, %v197, 0.0
  %208 = vadd.xlane.f32.xlu0 %v207
  %v209 = vpop.xlane.xlu0 %208
  %v210 = vmul.f32 %v184, 0.03125
  %v211 = vmul.f32 %v187, 0.03125
  %v212 = vmul.f32 %v190, 0.03125
  %v213 = vmul.f32 %v193, 0.03125
  %v214 = vmul.f32 %v200, 0.03125
  %v215 = vmul.f32 %v203, 0.03125
  %v216 = vmul.f32 %v206, 0.03125
  %v217 = vmul.f32 %v209, 0.03125
  %v218 = vmul.f32 %v210, %v210
  %v219 = vmul.f32 %v211, %v211
  %v220 = vmul.f32 %v212, %v212
  %v221 = vmul.f32 %v213, %v213
  %v222 = vsub.f32 %v214, %v218
  %v223 = vsub.f32 %v215, %v219
  %v224 = vsub.f32 %v216, %v220
  %v225 = vsub.f32 %v217, %v221
  %v226 = vmax.f32 %v222, 0.0
  %v227 = vmax.f32 %v223, 0.0
  %v228 = vmax.f32 %v224, 0.0
  %v229 = vmax.f32 %v225, 0.0
  %v230 = vsub.f32 %v170, %v210
  %v231 = vsub.f32 %v173, %v211
  %v232 = vsub.f32 %v176, %v212
  %v233 = vsub.f32 %v179, %v213
  %v234 = vadd.f32 %v226, 1e-05
  %v235 = vadd.f32 %v227, 1e-05
  %v236 = vadd.f32 %v228, 1e-05
  %v237 = vadd.f32 %v229, 1e-05
  %v238 = vrsqrt.pop %v234
  %v239 = vmul.f32 %v238, %v234
  %v240 = vmul.f32 %v239, %v238
  %v241 = vmul.f32 0.5, %v240
  %v242 = vsub.f32 1.5, %v241
  %v243 = vmul.f32 %v238, %v242
  %vm244 = vweird.f32 %v234
  %vm245 = vweird.f32 %v238
  %vm246 = vmor %vm244, %vm245
  %v247 = vsel %vm246, %v238, %v243
  %v248 = vrsqrt.pop %v235
  %v249 = vmul.f32 %v248, %v235
  %v250 = vmul.f32 %v249, %v248
  %v251 = vmul.f32 0.5, %v250
  %v252 = vsub.f32 1.5, %v251
  %v253 = vmul.f32 %v248, %v252
  %vm254 = vweird.f32 %v235
  %vm255 = vweird.f32 %v248
  %vm256 = vmor %vm254, %vm255
  %v257 = vsel %vm256, %v248, %v253
  %v258 = vrsqrt.pop %v236
  %v259 = vmul.f32 %v258, %v236
  %v260 = vmul.f32 %v259, %v258
  %v261 = vmul.f32 0.5, %v260
  %v262 = vsub.f32 1.5, %v261
  %v263 = vmul.f32 %v258, %v262
  %vm264 = vweird.f32 %v236
  %vm265 = vweird.f32 %v258
  %vm266 = vmor %vm264, %vm265
  %v267 = vsel %vm266, %v258, %v263
  %v268 = vrsqrt.pop %v237
  %v269 = vmul.f32 %v268, %v237
  %v270 = vmul.f32 %v269, %v268
  %v271 = vmul.f32 0.5, %v270
  %v272 = vsub.f32 1.5, %v271
  %v273 = vmul.f32 %v268, %v272
  %vm274 = vweird.f32 %v237
  %vm275 = vweird.f32 %v268
  %vm276 = vmor %vm274, %vm275
  %v277 = vsel %vm276, %v268, %v273
  %v278 = vmul.f32 %v230, %v247
  %v279 = vmul.f32 %v231, %v257
  %v280 = vmul.f32 %v232, %v267
  %v281 = vmul.f32 %v233, %v277
  %v282 = vld [vmem:[%s3] sm:$0x1]
  %v284 = vperm.slane %v282, 0
  %v286 = vmul.f32 %v278, %v284
  %v287 = vmul.f32 %v279, %v284
  %v288 = vmul.f32 %v280, %v284
  %v289 = vmul.f32 %v281, %v284
  %v290 = vld [vmem:[%s4] sm:$0xff]
  %v291 = vld [vmem:[%s4 + $0x8] sm:$0xff]
  %v292 = vadd.f32 %v286, %v290
  %v293 = vadd.f32 %v287, %v291
  %v294 = vadd.f32 %v288, %v290
  %v295 = vadd.f32 %v289, %v291
  %296 = vst.msk [vmem:[%s6 + $0x1] sm:$0xff] %vm181, %v292
  %297 = vst.msk [vmem:[%s6 + $0x9] sm:$0xff] %vm181, %v293
  %298 = vst.msk [vmem:[%s6 + $0x19] sm:$0xff] %vm181, %v294
  %299 = vst.msk [vmem:[%s6 + $0x21] sm:$0xff] %vm181, %v295
  %v300 = vld [vmem:[%s5] sm:$0x1]
  %vm301 = vcmask 253952
  %302 = vst.msk [vmem:[%s6] sm:$0x1] %vm301, %v300
  %303 = vst.msk [vmem:[%s6 + $0x18] sm:$0x1] %vm301, %v300
  // Predicated region
  $region26: #{encoder_forward.1} parent=0 // pred_check
    _
  $region27: #{encoder_forward.1} parent=0 // pred_check_branch
    %305 = sbr.rel (0) target = $region29
  $region28: #{encoder_forward.1} parent=0 // pred_region
    _
  $region29: #{encoder_forward.1} parent=0 // pred_fallthru
    _
  // Predicated region
  $region30: #{encoder_forward.1} parent=0 // pred_check
    _
  $region31: #{encoder_forward.1} parent=0 // pred_check_branch
    %307 = sbr.rel (0) target = $region33
  $region32: #{encoder_forward.1} parent=0 // pred_region
    _
  $region33: #{encoder_forward.1} parent=0 // pred_fallthru
    _

</llo_original>
